<compile_context>
chip_gen: v5e
topology: v5e:2x2
jax: 0.10.0
libtpu: 0.0.40
codegen_flags: <defaults>
</compile_context>

<pallas_src>
import jax
import jax.numpy as jnp
from jax.experimental import pallas as pl
from jax.experimental.pallas import tpu as pltpu


def _round_up(x: int, m: int) -> int:
    return (x + m - 1) // m * m


def ffn_kernel(x_ref, w1_ref, b1_ref, w2_ref, b2_ref, w3_ref, b3_ref, o_ref):
    k = pl.program_id(1)

    @pl.when(k == 0)
    def _init():
        # Start the resident output block at the bias; partial products add on.
        o_ref[...] = jnp.broadcast_to(b3_ref[...], o_ref.shape)

    # bf16 LHS so all three dots are single-pass bf16 MXU ops (f32 accumulate).
    x = x_ref[...].astype(jnp.bfloat16)                                  # (tm, H)

    gate = jnp.dot(x, w1_ref[...], preferred_element_type=jnp.float32) + b1_ref[...]
    up = jnp.dot(x, w2_ref[...], preferred_element_type=jnp.float32) + b2_ref[...]

    # SiLU(up) = up * sigmoid(up)  (exp/recip go to the EUP slot).
    act = up * jax.nn.sigmoid(up)

    # Reference fp32 path: round both operands to bf16 and multiply in bf16.
    inter = gate.astype(jnp.bfloat16) * act.astype(jnp.bfloat16)         # (tm, ti)

    # Linear3 partial product for this I-tile, accumulated into the output block.
    o_ref[...] += jnp.dot(inter, w3_ref[...], preferred_element_type=jnp.float32)


def _choose_tiles(M: int, H: int, I: int):
    """Generation-aware token/intermediate tile sizes and VMEM limit."""
    try:
        vmem_cap = int(pltpu.get_tpu_info().vmem_capacity_bytes)
    except Exception:
        vmem_cap = 64 << 20  # conservative: v7x per-TensorCore VMEM
    # Headroom for compiler internal scratch / semaphores / elementwise temps.
    vmem_limit = max(32 << 20, min(vmem_cap - (16 << 20), 100 << 20))

    # Token tile: bigger on 128 MiB parts (v5e/v6e), moderate on v7x.
    tm = 512 if vmem_limit >= (96 << 20) else 256
    tm = min(tm, _round_up(M, 8))
    # Keep >= 2 M tiles when possible so both v7x TensorCores get work.
    if pl.cdiv(M, tm) < 2 and M > 8:
        tm = _round_up(pl.cdiv(M, 2), 8)

    def fits(ti):
        w_bytes = 2 * (2 * H * ti + ti * H) * 2          # dbl-buffered bf16 W1,W2,W3
        xo_bytes = 2 * (tm * H * 4) * 2                  # dbl-buffered f32 x + out tiles
        tmp_bytes = tm * ti * 16                         # gate/up/act f32 + inter bf16
        return w_bytes + xo_bytes + tmp_bytes <= vmem_limit

    ti = None
    cand = I
    while cand >= 128:
        if I % cand == 0 and cand % 128 == 0 and fits(cand):
            ti = cand
            break
        cand -= 128
    if ti is None:
        ti = 128
    return tm, ti, vmem_limit


def ffn_pallas(x, w1, b1, w2, b2, w3, b3, *, tm=None, ti=None):
    """x: (M, H) fp32.  w1/w2: (H, I), w3: (I, H) (transposed vs torch Linear).
    b1/b2: (1, I), b3: (1, H)."""
    M, H = x.shape
    I = w1.shape[1]
    assert w1.shape == (H, I) and w2.shape == (H, I) and w3.shape == (I, H)
    assert b1.shape == (1, I) and b2.shape == (1, I) and b3.shape == (1, H)
    assert I % 128 == 0, "intermediate size must be lane-aligned"

    auto_tm, auto_ti, vmem_limit = _choose_tiles(M, H, I)
    tm = auto_tm if tm is None else min(tm, _round_up(M, 8))
    ti = auto_ti if ti is None else ti
    assert tm % 8 == 0
    assert I % ti == 0 and ti % 128 == 0, "intermediate tile must be lane-aligned"

    # bf16 weights: single-pass MXU matmuls, half the weight HBM/DMA bytes.
    w1b = w1.astype(jnp.bfloat16)
    w2b = w2.astype(jnp.bfloat16)
    w3b = w3.astype(jnp.bfloat16)

    grid = (pl.cdiv(M, tm), I // ti)

    return pl.pallas_call(
        ffn_kernel,
        out_shape=jax.ShapeDtypeStruct((M, H), jnp.float32),
        grid_spec=pltpu.PrefetchScalarGridSpec(
            num_scalar_prefetch=0,
            grid=grid,
            in_specs=[
                pl.BlockSpec((tm, H), lambda i, k: (i, 0)),   # x tile
                pl.BlockSpec((H, ti), lambda i, k: (0, k)),   # W1 column slab (bf16)
                pl.BlockSpec((1, ti), lambda i, k: (0, k)),   # b1 slice
                pl.BlockSpec((H, ti), lambda i, k: (0, k)),   # W2 column slab (bf16)
                pl.BlockSpec((1, ti), lambda i, k: (0, k)),   # b2 slice
                pl.BlockSpec((ti, H), lambda i, k: (k, 0)),   # W3 row slab (bf16)
                pl.BlockSpec((1, H), lambda i, k: (0, 0)),    # b3
            ],
            out_specs=pl.BlockSpec((tm, H), lambda i, k: (i, 0)),
        ),
        compiler_params=pltpu.CompilerParams(
            dimension_semantics=("parallel", "arbitrary"),
            vmem_limit_bytes=int(vmem_limit),
        ),
    )(x, w1b, b1, w2b, b2, w3b, b3)


def ffn_reference(x, w1, b1, w2, b2, w3, b3):
    hp = jax.lax.Precision.HIGHEST
    gate = jnp.dot(x, w1, precision=hp) + b1
    up = jnp.dot(x, w2, precision=hp) + b2
    act = up * jax.nn.sigmoid(up)
    inter = (gate.astype(jnp.bfloat16) * act.astype(jnp.bfloat16)).astype(jnp.float32)
    return jnp.dot(inter, w3, precision=hp) + b3


if __name__ == "__main__":
    # Small config consistent with the module (hidden_dim, intermediate_size).
    batch, seq = 2, 8
    hidden_dim = 128
    intermediate_size = 256

    key = jax.random.PRNGKey(0)
    kx, k1, k2, k3, k4, k5, k6 = jax.random.split(key, 7)

    x = jax.random.normal(kx, (batch, seq, hidden_dim), dtype=jnp.float32)

    # Deterministic torch-Linear-style init, transposed to (in, out).
    scale1 = 1.0 / jnp.sqrt(hidden_dim)
    scale3 = 1.0 / jnp.sqrt(intermediate_size)
    w1 = jax.random.uniform(k1, (hidden_dim, intermediate_size), jnp.float32, -scale1, scale1)
    b1 = jax.random.uniform(k2, (1, intermediate_size), jnp.float32, -scale1, scale1)
    w2 = jax.random.uniform(k3, (hidden_dim, intermediate_size), jnp.float32, -scale1, scale1)
    b2 = jax.random.uniform(k4, (1, intermediate_size), jnp.float32, -scale1, scale1)
    w3 = jax.random.uniform(k5, (intermediate_size, hidden_dim), jnp.float32, -scale3, scale3)
    b3 = jax.random.uniform(k6, (1, hidden_dim), jnp.float32, -scale3, scale3)

    x2d = x.reshape(batch * seq, hidden_dim)
    ref = ffn_reference(x2d, w1, b1, w2, b2, w3, b3)

    # Tolerance sized for the bf16 operand path (module already rounds the
    # intermediate to bf16; weight/x bf16 rounding adds ~1e-3 relative error).
    def check(a, b):
        assert a.shape == b.shape
        assert jnp.allclose(a, b, atol=2e-2, rtol=2e-2), "mismatch vs reference"

    # 1) Auto config: ti == I (VMEM-resident weights, single weight DMA), 2 M tiles.
    out = ffn_pallas(x2d, w1, b1, w2, b2, w3, b3)
    out = jax.block_until_ready(out)
    check(out, ref)
    assert out.reshape(batch, seq, hidden_dim).shape == (batch, seq, hidden_dim)

    # 2) Forced ti=128: exercises the multi-step I-dim accumulation into o_ref.
    out2 = jax.block_until_ready(ffn_pallas(x2d, w1, b1, w2, b2, w3, b3, tm=8, ti=128))
    check(out2, ref)

    # 3) Ragged token count (no wrapper-side padding; last tile handled by Pallas).
    x_ragged = x2d[:13]
    out3 = jax.block_until_ready(ffn_pallas(x_ragged, w1, b1, w2, b2, w3, b3))
    check(out3, ref[:13])

    print("KERNEL_OK")
</pallas_src>

<mosaic_0001>
module attributes {stable_mosaic.version = 11 : i64} {
  func.func @ffn_kernel(%arg0: i32, %arg1: i32, %arg2: memref<8x128xf32, #tpu.memory_space<vmem>>, %arg3: memref<128x256xbf16, #tpu.memory_space<vmem>>, %arg4: memref<1x256xf32, #tpu.memory_space<vmem>>, %arg5: memref<128x256xbf16, #tpu.memory_space<vmem>>, %arg6: memref<1x256xf32, #tpu.memory_space<vmem>>, %arg7: memref<256x128xbf16, #tpu.memory_space<vmem>>, %arg8: memref<1x128xf32, #tpu.memory_space<vmem>>, %arg9: memref<8x128xf32, #tpu.memory_space<vmem>>) attributes {dimension_semantics = [#tpu.dimension_semantics<parallel>, #tpu.dimension_semantics<arbitrary>], iteration_bounds = array<i64: 2, 1>, scalar_prefetch = 0 : i64, scratch_operands = 0 : i64, tpu.core_type = #tpu.core_type<tc>, window_params = [{transform_indices = @transform_0, window_bounds = array<i64: 8, 128>}, {transform_indices = @transform_1, window_bounds = array<i64: 128, 256>}, {transform_indices = @transform_2, window_bounds = array<i64: 1, 256>}, {transform_indices = @transform_3, window_bounds = array<i64: 128, 256>}, {transform_indices = @transform_4, window_bounds = array<i64: 1, 256>}, {transform_indices = @transform_5, window_bounds = array<i64: 256, 128>}, {pipeline_mode = #tpu.pipeline_mode<synchronous>, transform_indices = @transform_6, window_bounds = array<i64: 1, 128>}, {transform_indices = @transform_7, window_bounds = array<i64: 8, 128>}]} {
    %c0_i32 = arith.constant 0 : i32
    %0 = arith.cmpi eq, %arg1, %c0_i32 : i32
    %1 = arith.extui %0 : i1 to i32
    %c0_i32_0 = arith.constant 0 : i32
    %2 = arith.cmpi ne, %1, %c0_i32_0 : i32
    scf.if %2 {
      %c0_19 = arith.constant 0 : index
      %c0_20 = arith.constant 0 : index
      %29 = vector.load %arg8[%c0_19, %c0_20] : memref<1x128xf32, #tpu.memory_space<vmem>>, vector<1x128xf32>
      %30 = vector.shape_cast %29 : vector<1x128xf32> to vector<1x128xf32>
      %31 = vector.broadcast %30 : vector<1x128xf32> to vector<8x128xf32>
      %c0_21 = arith.constant 0 : index
      %c0_22 = arith.constant 0 : index
      %32 = vector.load %arg9[%c0_21, %c0_22] : memref<8x128xf32, #tpu.memory_space<vmem>>, vector<8x128xf32>
      tpu.vector_store %arg9[%c0_21, %c0_22], %31 {strides = array<i32>} : memref<8x128xf32, #tpu.memory_space<vmem>>, vector<8x128xf32>,
    } else {
    }
    %c0 = arith.constant 0 : index
    %c0_1 = arith.constant 0 : index
    %3 = vector.load %arg2[%c0, %c0_1] : memref<8x128xf32, #tpu.memory_space<vmem>>, vector<8x128xf32>
    %4 = arith.truncf %3 : vector<8x128xf32> to vector<8x128xbf16>
    %c0_2 = arith.constant 0 : index
    %c0_3 = arith.constant 0 : index
    %5 = vector.load %arg3[%c0_2, %c0_3] : memref<128x256xbf16, #tpu.memory_space<vmem>>, vector<128x256xbf16>
    %cst = arith.constant dense<0.000000e+00> : vector<8x256xf32>
    %6 = tpu.matmul %4, %5, %cst {dimension_numbers = #tpu.dot_dimension_numbers<[1], [0], [0], [1], [0, 0, 1, 1], [], []>} : vector<8x128xbf16>, vector<128x256xbf16>, vector<8x256xf32> -> vector<8x256xf32>
    %c0_4 = arith.constant 0 : index
    %c0_5 = arith.constant 0 : index
    %7 = vector.load %arg4[%c0_4, %c0_5] : memref<1x256xf32, #tpu.memory_space<vmem>>, vector<1x256xf32>
    %8 = vector.broadcast %7 : vector<1x256xf32> to vector<8x256xf32>
    %9 = arith.addf %6, %8 : vector<8x256xf32>
    %c0_6 = arith.constant 0 : index
    %c0_7 = arith.constant 0 : index
    %10 = vector.load %arg5[%c0_6, %c0_7] : memref<128x256xbf16, #tpu.memory_space<vmem>>, vector<128x256xbf16>
    %cst_8 = arith.constant dense<0.000000e+00> : vector<8x256xf32>
    %11 = tpu.matmul %4, %10, %cst_8 {dimension_numbers = #tpu.dot_dimension_numbers<[1], [0], [0], [1], [0, 0, 1, 1], [], []>} : vector<8x128xbf16>, vector<128x256xbf16>, vector<8x256xf32> -> vector<8x256xf32>
    %c0_9 = arith.constant 0 : index
    %c0_10 = arith.constant 0 : index
    %12 = vector.load %arg6[%c0_9, %c0_10] : memref<1x256xf32, #tpu.memory_space<vmem>>, vector<1x256xf32>
    %13 = vector.broadcast %12 : vector<1x256xf32> to vector<8x256xf32>
    %14 = arith.addf %11, %13 : vector<8x256xf32>
    %15 = arith.negf %14 : vector<8x256xf32>
    %16 = math.exp %15 : vector<8x256xf32>
    %cst_11 = arith.constant 1.000000e+00 : f32
    %17 = vector.broadcast %cst_11 : f32 to vector<8x256xf32>
    %18 = arith.addf %17, %16 : vector<8x256xf32>
    %19 = arith.divf %17, %18 : vector<8x256xf32>
    %20 = arith.mulf %14, %19 : vector<8x256xf32>
    %21 = arith.truncf %9 : vector<8x256xf32> to vector<8x256xbf16>
    %22 = arith.truncf %20 : vector<8x256xf32> to vector<8x256xbf16>
    %23 = arith.mulf %21, %22 : vector<8x256xbf16>
    %c0_12 = arith.constant 0 : index
    %c0_13 = arith.constant 0 : index
    %24 = vector.load %arg9[%c0_12, %c0_13] : memref<8x128xf32, #tpu.memory_space<vmem>>, vector<8x128xf32>
    %c0_14 = arith.constant 0 : index
    %c0_15 = arith.constant 0 : index
    %25 = vector.load %arg7[%c0_14, %c0_15] : memref<256x128xbf16, #tpu.memory_space<vmem>>, vector<256x128xbf16>
    %cst_16 = arith.constant dense<0.000000e+00> : vector<8x128xf32>
    %26 = tpu.matmul %23, %25, %cst_16 {dimension_numbers = #tpu.dot_dimension_numbers<[1], [0], [0], [1], [0, 0, 1, 1], [], []>} : vector<8x256xbf16>, vector<256x128xbf16>, vector<8x128xf32> -> vector<8x128xf32>
    %27 = arith.addf %24, %26 : vector<8x128xf32>
    %c0_17 = arith.constant 0 : index
    %c0_18 = arith.constant 0 : index
    %28 = vector.load %arg9[%c0_17, %c0_18] : memref<8x128xf32, #tpu.memory_space<vmem>>, vector<8x128xf32>
    tpu.vector_store %arg9[%c0_17, %c0_18], %27 {strides = array<i32>} : memref<8x128xf32, #tpu.memory_space<vmem>>, vector<8x128xf32>,
    return
  }
  func.func @transform_0(%arg0: i32, %arg1: i32) -> (i32, i32) {
    %c0_i32 = arith.constant 0 : i32
    %c0_i32_0 = arith.constant 0 : i32
    return %arg0, %c0_i32 : i32, i32
  }
  func.func @transform_1(%arg0: i32, %arg1: i32) -> (i32, i32) {
    %c0_i32 = arith.constant 0 : i32
    %c0_i32_0 = arith.constant 0 : i32
    return %c0_i32, %arg1 : i32, i32
  }
  func.func @transform_2(%arg0: i32, %arg1: i32) -> (i32, i32) {
    %c0_i32 = arith.constant 0 : i32
    %c0_i32_0 = arith.constant 0 : i32
    return %c0_i32, %arg1 : i32, i32
  }
  func.func @transform_3(%arg0: i32, %arg1: i32) -> (i32, i32) {
    %c0_i32 = arith.constant 0 : i32
    %c0_i32_0 = arith.constant 0 : i32
    return %c0_i32, %arg1 : i32, i32
  }
  func.func @transform_4(%arg0: i32, %arg1: i32) -> (i32, i32) {
    %c0_i32 = arith.constant 0 : i32
    %c0_i32_0 = arith.constant 0 : i32
    return %c0_i32, %arg1 : i32, i32
  }
  func.func @transform_5(%arg0: i32, %arg1: i32) -> (i32, i32) {
    %c0_i32 = arith.constant 0 : i32
    %c0_i32_0 = arith.constant 0 : i32
    return %arg1, %c0_i32 : i32, i32
  }
  func.func @transform_6(%arg0: i32, %arg1: i32) -> (i32, i32) {
    %c0_i32 = arith.constant 0 : i32
    %c0_i32_0 = arith.constant 0 : i32
    %c0_i32_1 = arith.constant 0 : i32
    return %c0_i32, %c0_i32_0 : i32, i32
  }
  func.func @transform_7(%arg0: i32, %arg1: i32) -> (i32, i32) {
    %c0_i32 = arith.constant 0 : i32
    %c0_i32_0 = arith.constant 0 : i32
    return %arg0, %c0_i32 : i32, i32
  }
}

</mosaic_0001>

<llo_original>
// kernel: tpu_custom_call.1
$region0: #{tpu_custom_call.1}
  #allocation0 [shape = 'u32[]', space=smem, size = 0x4, offset = 0x4, fixed_abs, tag = 'smem constant byte address 0x4 - core index']
  #allocation1 [shape = 'u32[72,128]{1,0:T(1,128)}', space=vmem, size = 0x9000, scoped, tag = 'internal scratch']
  %s0 = inlined_call_operand.hbm [shape: f32[16,128], index: 0, kind: input, shape index: {}]
  %s1 = inlined_call_operand.hbm [shape: bf16[128,256], index: 1, kind: input, shape index: {}]
  %s2 = inlined_call_operand.hbm [shape: f32[1,256], index: 2, kind: input, shape index: {}]
  %s3 = inlined_call_operand.hbm [shape: bf16[128,256], index: 3, kind: input, shape index: {}]
  %s4 = inlined_call_operand.vmem [shape: f32[1,256], index: 4, kind: input, shape index: {}]
  %s5 = inlined_call_operand.hbm [shape: bf16[256,128], index: 5, kind: input, shape index: {}]
  %s6 = inlined_call_operand.vmem [shape: f32[1,128], index: 6, kind: input, shape index: {}]
  %s7 = inlined_call_operand.hbm [shape: f32[16,128], index: 7, kind: output, shape index: {}]
  %s8 = sld [smem:[#allocation0]]
  $region85: #{tpu_custom_call.1} parent=0
    _
  %s10 = ssub.s32 1, %s8
  %s11 = scalar_select 0, %s10, %s8
  $region1: #{tpu_custom_call.1} parent=0
    #allocation2 [shape = 'u8[8192]{0}', space=vmem, size = 0x2000, scoped, tag = 'input window, operand 0']
    #allocation3 [shape = 's32[2]{0}', space=sflag, size = 0x8, scoped, tag = 'scoped memory for tpu_custom_call.1']
    #allocation4 [shape = 's32[2]{0}', space=sflag, size = 0x8, scoped, tag = 'scoped memory for tpu_custom_call.1']
    #allocation5 [shape = 'u8[65536]{0}', space=vmem, size = 0x10000, scoped, tag = 'input window, operand 1, single buffered']
    #allocation6 [shape = 's32[1]{0}', space=sflag, size = 0x4, scoped, tag = 'scoped memory for tpu_custom_call.1']
    #allocation7 [shape = 'u8[1024]{0}', space=vmem, size = 0x400, scoped, tag = 'input window, operand 2, single buffered']
    #allocation8 [shape = 'u8[65536]{0}', space=vmem, size = 0x10000, scoped, tag = 'input window, operand 3, single buffered']
    #allocation9 [shape = 's32[1]{0}', space=sflag, size = 0x4, scoped, tag = 'scoped memory for tpu_custom_call.1']
    #allocation10 [shape = 'u8[65536]{0}', space=vmem, size = 0x10000, scoped, tag = 'input window, operand 5, single buffered']
    #allocation11 [shape = 'u8[8192]{0}', space=vmem, size = 0x2000, scoped, tag = 'output window, operand 0']
    %12 = vsyncpa [#allocation3], 0
    %s13 = scalar_lea.sflag [#allocation3], 1
    %14 = vsyncpa %s13, 0
    %15 = vsyncpa [#allocation6], 0
    %16 = vsyncpa [#allocation9], 0
    %17 = vsyncpa [#allocation4], 0
    %s18 = scalar_lea.sflag [#allocation4], 1
    %19 = vsyncpa %s18, 0
    loop: start=0, step=1, limit=4
    $region2: #{tpu_custom_call.1} parent=1 // loop_pre_header
      _
    $region3: #{tpu_custom_call.1} parent=1 // loop_header
      %s21 = sphi 0, %s25
      %p22 = scmp.ge.s32.totalorder %s21, 4
      %s28 = sphi 0, %s40
      %s29 = sphi 0, %s36
      %s30 = sphi 0, %s28
      %s31 = sphi 0, %s29
      %s32 = sphi 0, %s30
      %s33 = sphi 0, %s31
      %s43 = sphi 0, %s45
      %s46 = sphi 0, %s43
      %s47 = sphi 0, %s46
      %s63 = sphi 0, %s47
      %s69 = sphi 0, %s71
      %s72 = sphi 0, %s69
      %s73 = sphi 0, %s72
      %s89 = sphi 0, %s73
      %s95 = sphi 0, %s97
      %s98 = sphi 0, %s95
      %s99 = sphi 0, %s98
      %s115 = sphi 0, %s99
      %s121 = sphi 0, %s123
      %s124 = sphi 0, %s121
      %s125 = sphi 0, %s124
      %s141 = sphi 0, %s125
      %s147 = sphi 0, %s149
      %s150 = sphi 0, %s147
      %s151 = sphi 0, %s150
      %s167 = sphi 0, %s151
      %s173 = sphi 0, %s175
      %s176 = sphi 0, %s173
      %s177 = sphi 0, %s176
      %s193 = sphi 0, %s177
      %s197 = sphi 0, %s197
      %s199 = sphi 0, %s197
      %s200 = sphi 0, %s199
      %s214 = sphi 0, %s200
      %s220 = sphi 0, %s222
      %s223 = sphi 0, %s220
      %s224 = sphi 0, %s223
      %s240 = sphi 0, %s224
    $region4: #{tpu_custom_call.1} parent=1 // loop_header_branch
      %24 = sbr.rel (%p22) target = $region8
    $region5: #{tpu_custom_call.1} parent=1 // loop_body
      %s26 = ssub.s32 %s21, 1
      %s27 = ssub.s32 %s21, 2
      %s34 = sadd.s32 1, %s29
      %p35 = scmp.ge.s32.totalorder %s34, 1
      %s36 = scalar_select %p35, 0, %s34
      %s37 = sadd.s32 1, %s28
      %s38 = scalar_select %p35, %s37, %s28
      %p39 = scmp.ge.s32.totalorder %s38, 2
      %s40 = scalar_select %p39, 0, %s38
      %s41 = ssub.s32 %s28, %s40
      %p42 = scmp.eq.s32.totalorder %s41, 0
      %s44 = sadd.s32 %s43, 1
      %s45 = scalar_select %p42, %s43, %s44
      %p48 = pneg %p42
      %p49 = scmp.eq.s32.totalorder %s21, 1
      %p50 = por %p48, %p49
      %p51 = scmp.ne.s32.totalorder %s43, %s46
      %p52 = scmp.eq.s32.totalorder %s21, 0
      %p53 = por %p51, %p52
      %p54 = scmp.ne.s32.totalorder %s43, %s46
      %p55 = scmp.eq.s32.totalorder %s26, 1
      %p56 = por %p54, %p55
      %p57 = scmp.ne.s32.totalorder %s46, %s47
      %p58 = scmp.eq.s32.totalorder %s26, 0
      %p59 = por %p57, %p58
      %p60 = scmp.ne.s32.totalorder %s46, %s47
      %p61 = scmp.eq.s32.totalorder %s27, 1
      %p62 = por %p60, %p61
      %p64 = scmp.ne.s32.totalorder %s47, %s63
      %p65 = scmp.eq.s32.totalorder %s27, 0
      %p66 = por %p64, %p65
      %s67 = ssub.s32 %s29, %s36
      %p68 = scmp.eq.s32.totalorder %s67, 0
      %s70 = sadd.s32 %s69, 1
      %s71 = scalar_select %p68, %s69, %s70
      %p74 = pneg %p68
      %p75 = scmp.eq.s32.totalorder %s21, 1
      %p76 = por %p74, %p75
      %p77 = scmp.ne.s32.totalorder %s69, %s72
      %p78 = scmp.eq.s32.totalorder %s21, 0
      %p79 = por %p77, %p78
      %p80 = scmp.ne.s32.totalorder %s69, %s72
      %p81 = scmp.eq.s32.totalorder %s26, 1
      %p82 = por %p80, %p81
      %p83 = scmp.ne.s32.totalorder %s72, %s73
      %p84 = scmp.eq.s32.totalorder %s26, 0
      %p85 = por %p83, %p84
      %p86 = scmp.ne.s32.totalorder %s72, %s73
      %p87 = scmp.eq.s32.totalorder %s27, 1
      %p88 = por %p86, %p87
      %p90 = scmp.ne.s32.totalorder %s73, %s89
      %p91 = scmp.eq.s32.totalorder %s27, 0
      %p92 = por %p90, %p91
      %s93 = ssub.s32 %s29, %s36
      %p94 = scmp.eq.s32.totalorder %s93, 0
      %s96 = sadd.s32 %s95, 1
      %s97 = scalar_select %p94, %s95, %s96
      %p100 = pneg %p94
      %p101 = scmp.eq.s32.totalorder %s21, 1
      %p102 = por %p100, %p101
      %p103 = scmp.ne.s32.totalorder %s95, %s98
      %p104 = scmp.eq.s32.totalorder %s21, 0
      %p105 = por %p103, %p104
      %p106 = scmp.ne.s32.totalorder %s95, %s98
      %p107 = scmp.eq.s32.totalorder %s26, 1
      %p108 = por %p106, %p107
      %p109 = scmp.ne.s32.totalorder %s98, %s99
      %p110 = scmp.eq.s32.totalorder %s26, 0
      %p111 = por %p109, %p110
      %p112 = scmp.ne.s32.totalorder %s98, %s99
      %p113 = scmp.eq.s32.totalorder %s27, 1
      %p114 = por %p112, %p113
      %p116 = scmp.ne.s32.totalorder %s99, %s115
      %p117 = scmp.eq.s32.totalorder %s27, 0
      %p118 = por %p116, %p117
      %s119 = ssub.s32 %s29, %s36
      %p120 = scmp.eq.s32.totalorder %s119, 0
      %s122 = sadd.s32 %s121, 1
      %s123 = scalar_select %p120, %s121, %s122
      %p126 = pneg %p120
      %p127 = scmp.eq.s32.totalorder %s21, 1
      %p128 = por %p126, %p127
      %p129 = scmp.ne.s32.totalorder %s121, %s124
      %p130 = scmp.eq.s32.totalorder %s21, 0
      %p131 = por %p129, %p130
      %p132 = scmp.ne.s32.totalorder %s121, %s124
      %p133 = scmp.eq.s32.totalorder %s26, 1
      %p134 = por %p132, %p133
      %p135 = scmp.ne.s32.totalorder %s124, %s125
      %p136 = scmp.eq.s32.totalorder %s26, 0
      %p137 = por %p135, %p136
      %p138 = scmp.ne.s32.totalorder %s124, %s125
      %p139 = scmp.eq.s32.totalorder %s27, 1
      %p140 = por %p138, %p139
      %p142 = scmp.ne.s32.totalorder %s125, %s141
      %p143 = scmp.eq.s32.totalorder %s27, 0
      %p144 = por %p142, %p143
      %s145 = ssub.s32 %s29, %s36
      %p146 = scmp.eq.s32.totalorder %s145, 0
      %s148 = sadd.s32 %s147, 1
      %s149 = scalar_select %p146, %s147, %s148
      %p152 = pneg %p146
      %p153 = scmp.eq.s32.totalorder %s21, 1
      %p154 = por %p152, %p153
      %p155 = scmp.ne.s32.totalorder %s147, %s150
      %p156 = scmp.eq.s32.totalorder %s21, 0
      %p157 = por %p155, %p156
      %p158 = scmp.ne.s32.totalorder %s147, %s150
      %p159 = scmp.eq.s32.totalorder %s26, 1
      %p160 = por %p158, %p159
      %p161 = scmp.ne.s32.totalorder %s150, %s151
      %p162 = scmp.eq.s32.totalorder %s26, 0
      %p163 = por %p161, %p162
      %p164 = scmp.ne.s32.totalorder %s150, %s151
      %p165 = scmp.eq.s32.totalorder %s27, 1
      %p166 = por %p164, %p165
      %p168 = scmp.ne.s32.totalorder %s151, %s167
      %p169 = scmp.eq.s32.totalorder %s27, 0
      %p170 = por %p168, %p169
      %s171 = ssub.s32 %s29, %s36
      %p172 = scmp.eq.s32.totalorder %s171, 0
      %s174 = sadd.s32 %s173, 1
      %s175 = scalar_select %p172, %s173, %s174
      %p178 = pneg %p172
      %p179 = scmp.eq.s32.totalorder %s21, 1
      %p180 = por %p178, %p179
      %p181 = scmp.ne.s32.totalorder %s173, %s176
      %p182 = scmp.eq.s32.totalorder %s21, 0
      %p183 = por %p181, %p182
      %p184 = scmp.ne.s32.totalorder %s173, %s176
      %p185 = scmp.eq.s32.totalorder %s26, 1
      %p186 = por %p184, %p185
      %p187 = scmp.ne.s32.totalorder %s176, %s177
      %p188 = scmp.eq.s32.totalorder %s26, 0
      %p189 = por %p187, %p188
      %p190 = scmp.ne.s32.totalorder %s176, %s177
      %p191 = scmp.eq.s32.totalorder %s27, 1
      %p192 = por %p190, %p191
      %p194 = scmp.ne.s32.totalorder %s177, %s193
      %p195 = scmp.eq.s32.totalorder %s27, 0
      %p196 = por %p194, %p195
      %s198 = sadd.s32 %s197, 1
      %p201 = scmp.eq.s32.totalorder %s21, 1
      %p202 = scmp.ne.s32.totalorder %s197, %s199
      %p203 = scmp.eq.s32.totalorder %s21, 0
      %p204 = por %p202, %p203
      %p205 = scmp.ne.s32.totalorder %s197, %s199
      %p206 = scmp.eq.s32.totalorder %s26, 1
      %p207 = por %p205, %p206
      %p208 = scmp.ne.s32.totalorder %s199, %s200
      %p209 = scmp.eq.s32.totalorder %s26, 0
      %p210 = por %p208, %p209
      %p211 = scmp.ne.s32.totalorder %s199, %s200
      %p212 = scmp.eq.s32.totalorder %s27, 1
      %p213 = por %p211, %p212
      %p215 = scmp.ne.s32.totalorder %s200, %s214
      %p216 = scmp.eq.s32.totalorder %s27, 0
      %p217 = por %p215, %p216
      %s218 = ssub.s32 %s28, %s40
      %p219 = scmp.eq.s32.totalorder %s218, 0
      %s221 = sadd.s32 %s220, 1
      %s222 = scalar_select %p219, %s220, %s221
      %p225 = pneg %p219
      %p226 = scmp.eq.s32.totalorder %s21, 1
      %p227 = por %p225, %p226
      %p228 = scmp.ne.s32.totalorder %s220, %s223
      %p229 = scmp.eq.s32.totalorder %s21, 0
      %p230 = por %p228, %p229
      %p231 = scmp.ne.s32.totalorder %s220, %s223
      %p232 = scmp.eq.s32.totalorder %s26, 1
      %p233 = por %p231, %p232
      %p234 = scmp.ne.s32.totalorder %s223, %s224
      %p235 = scmp.eq.s32.totalorder %s26, 0
      %p236 = por %p234, %p235
      %p237 = scmp.ne.s32.totalorder %s223, %s224
      %p238 = scmp.eq.s32.totalorder %s27, 1
      %p239 = por %p237, %p238
      %p241 = scmp.ne.s32.totalorder %s224, %s240
      %p242 = scmp.eq.s32.totalorder %s27, 0
      %p243 = por %p241, %p242
      %p244 = scmp.le.s32.totalorder 1, %s21
      %p245 = scmp.lt.s32.totalorder %s21, 3
      %p246 = pnand %p244, %p245
      %p247 = pneg %p246
      // Predicated region
      $region9: #{tpu_custom_call.1} parent=5 // pred_check
        _
      $region10: #{tpu_custom_call.1} parent=5 // pred_check_branch
        %249 = sbr.rel (%p246) target = $region12
      $region11: #{tpu_custom_call.1} parent=5 // pred_region
        %s250 = ssub.s32 %s21, 1
        // Predicated region
        $region13: #{tpu_custom_call.1} parent=11 // pred_check
          %p251 = pneg %p85
        $region14: #{tpu_custom_call.1} parent=11 // pred_check_branch
          %253 = sbr.rel (%p251) target = $region16
        $region15: #{tpu_custom_call.1} parent=11 // pred_region
          %s254 = smul.u32 2, %s31
          %256 = vsyncadd [#allocation6], 0
          %s257 = smul.addr %s254, 4
          %s258 = scalar_lea.hbm %s1, %s257
          %s259 = sshll.u32 %s258, 4
          %s260 = int_to_ptr.hbm [resolvable:$true] %s259
          %s261 = sshll.u32 [#allocation5], 4
          %s262 = int_to_ptr.vmem [resolvable:$true] %s261
          %267 = dma.hbm_to_vmem [thread:$0]  %s260, 2048, %s262, [#allocation6], 128, 128, 8
        $region16: #{tpu_custom_call.1} parent=11 // pred_fallthru
          _
        // Predicated region
        $region17: #{tpu_custom_call.1} parent=11 // pred_check
          %p268 = pneg %p111
        $region18: #{tpu_custom_call.1} parent=11 // pred_check_branch
          %270 = sbr.rel (%p268) target = $region20
        $region19: #{tpu_custom_call.1} parent=11 // pred_region
          %s271 = smul.u32 2, %s31
          %273 = vsyncadd [#allocation6], 0
          %s274 = scalar_lea.hbm %s2, %s271
          %s276 = sshll.u32 %s274, 4
          %s277 = int_to_ptr.hbm [resolvable:$true] %s276
          %s278 = sshll.u32 [#allocation7], 4
          %s279 = int_to_ptr.vmem [resolvable:$true] %s278
          %281 = dma.hbm_to_vmem [thread:$0]  %s277, 32, %s279, [#allocation6]
        $region20: #{tpu_custom_call.1} parent=11 // pred_fallthru
          _
        // Predicated region
        $region21: #{tpu_custom_call.1} parent=11 // pred_check
          %p282 = pneg %p137
        $region22: #{tpu_custom_call.1} parent=11 // pred_check_branch
          %284 = sbr.rel (%p282) target = $region24
        $region23: #{tpu_custom_call.1} parent=11 // pred_region
          %s285 = smul.u32 2, %s31
          %287 = vsyncadd [#allocation9], 0
          %s288 = smul.addr %s285, 4
          %s289 = scalar_lea.hbm %s3, %s288
          %s290 = sshll.u32 %s289, 4
          %s291 = int_to_ptr.hbm [resolvable:$true] %s290
          %s292 = sshll.u32 [#allocation8], 4
          %s293 = int_to_ptr.vmem [resolvable:$true] %s292
          %298 = dma.hbm_to_vmem [thread:$0]  %s291, 2048, %s293, [#allocation9], 128, 128, 8
        $region24: #{tpu_custom_call.1} parent=11 // pred_fallthru
          _
        // Predicated region
        $region25: #{tpu_custom_call.1} parent=11 // pred_check
          %p299 = pneg %p163
        $region26: #{tpu_custom_call.1} parent=11 // pred_check_branch
          %301 = sbr.rel (%p299) target = $region28
        $region27: #{tpu_custom_call.1} parent=11 // pred_region
          %s302 = smul.u32 2, %s31
          %p303 = scmp.lt.s32.totalorder %s302, 1
          %s304 = scalar_select %p303, %s302, 1
          %s305 = scalar_lea.vmem %s4, %s304
          %s306 = smul.u32 2, %s31
        $region28: #{tpu_custom_call.1} parent=11 // pred_fallthru
          _
        // Predicated region
        $region29: #{tpu_custom_call.1} parent=11 // pred_check
          %p307 = pneg %p189
        $region30: #{tpu_custom_call.1} parent=11 // pred_check_branch
          %309 = sbr.rel (%p307) target = $region32
        $region31: #{tpu_custom_call.1} parent=11 // pred_region
          %s310 = smul.u32 32, %s31
          %312 = vsyncadd [#allocation9], 0
          %s313 = smul.addr %s310, 4
          %s314 = scalar_lea.hbm %s5, %s313
          %s315 = sshll.u32 %s314, 4
          %s316 = int_to_ptr.hbm [resolvable:$true] %s315
          %s317 = sshll.u32 [#allocation10], 4
          %s318 = int_to_ptr.vmem [resolvable:$true] %s317
          %323 = dma.hbm_to_vmem [thread:$0]  %s316, 2048, %s318, [#allocation9], 64, 64, 4
        $region32: #{tpu_custom_call.1} parent=11 // pred_fallthru
          _
        // Predicated region
        $region33: #{tpu_custom_call.1} parent=11 // pred_check
          %p324 = pneg %p210
        $region34: #{tpu_custom_call.1} parent=11 // pred_check_branch
          %326 = sbr.rel (%p324) target = $region36
        $region35: #{tpu_custom_call.1} parent=11 // pred_region
          _
        $region36: #{tpu_custom_call.1} parent=11 // pred_fallthru
          _
      $region12: #{tpu_custom_call.1} parent=5 // pred_fallthru
        _
      %p327 = scmp.lt.s32.totalorder %s21, 2
      // Predicated region
      $region37: #{tpu_custom_call.1} parent=5 // pred_check
        %p328 = pneg %p327
      $region38: #{tpu_custom_call.1} parent=5 // pred_check_branch
        %330 = sbr.rel (%p328) target = $region40
      $region39: #{tpu_custom_call.1} parent=5 // pred_region
        // Predicated region
        $region41: #{tpu_custom_call.1} parent=39 // pred_check
          %p331 = pneg %p53
        $region42: #{tpu_custom_call.1} parent=39 // pred_check_branch
          %333 = sbr.rel (%p331) target = $region44
        $region43: #{tpu_custom_call.1} parent=39 // pred_region
          %s334 = sand.u32 %s43, 1
          %s335 = scalar_lea.sflag [#allocation3], %s334
          %s336 = sand.u32 %s43, 1
          %s337 = smul.addr %s336, 8
          %s338 = scalar_lea.vmem [#allocation2], %s337
          %340 = vsyncadd %s335, 0
          %s341 = smul.addr %s28, 8
          %s342 = scalar_lea.hbm %s0, %s341
          %s344 = sshll.u32 %s342, 4
          %s345 = int_to_ptr.hbm [resolvable:$true] %s344
          %s346 = sshll.u32 %s338, 4
          %s347 = int_to_ptr.vmem [resolvable:$true] %s346
          %349 = dma.hbm_to_vmem [thread:$0]  %s345, 128, %s347, %s335
        $region44: #{tpu_custom_call.1} parent=39 // pred_fallthru
          _
      $region40: #{tpu_custom_call.1} parent=5 // pred_fallthru
        _
      %p350 = scmp.le.s32.totalorder 1, %s21
      %p351 = scmp.lt.s32.totalorder %s21, 3
      %p352 = pnand %p350, %p351
      %p353 = pneg %p352
      // Predicated region
      $region45: #{tpu_custom_call.1} parent=5 // pred_check
        _
      $region46: #{tpu_custom_call.1} parent=5 // pred_check_branch
        %355 = sbr.rel (%p352) target = $region48
      $region47: #{tpu_custom_call.1} parent=5 // pred_region
        %s356 = ssub.s32 %s21, 1
        %s357 = sand.u32 %s46, 1
        %s358 = scalar_lea.sflag [#allocation3], %s357
        %s359 = sand.u32 %s46, 1
        %s360 = smul.addr %s359, 8
        %s361 = scalar_lea.vmem [#allocation2], %s360
        // Predicated region
        $region49: #{tpu_custom_call.1} parent=47 // pred_check
          %p362 = pneg %p59
        $region50: #{tpu_custom_call.1} parent=47 // pred_check_branch
          %364 = sbr.rel (%p362) target = $region52
        $region51: #{tpu_custom_call.1} parent=47 // pred_region
          %366 = dma.done %s358, 128
        $region52: #{tpu_custom_call.1} parent=47 // pred_fallthru
          _
        // Predicated region
        $region53: #{tpu_custom_call.1} parent=47 // pred_check
          %p367 = pneg %p85
        $region54: #{tpu_custom_call.1} parent=47 // pred_check_branch
          %369 = sbr.rel (%p367) target = $region56
        $region55: #{tpu_custom_call.1} parent=47 // pred_region
          %371 = dma.done [#allocation6], 2048
        $region56: #{tpu_custom_call.1} parent=47 // pred_fallthru
          _
        // Predicated region
        $region57: #{tpu_custom_call.1} parent=47 // pred_check
          %p372 = pneg %p111
        $region58: #{tpu_custom_call.1} parent=47 // pred_check_branch
          %374 = sbr.rel (%p372) target = $region60
        $region59: #{tpu_custom_call.1} parent=47 // pred_region
          %376 = dma.done [#allocation6], 32
        $region60: #{tpu_custom_call.1} parent=47 // pred_fallthru
          _
        // Predicated region
        $region61: #{tpu_custom_call.1} parent=47 // pred_check
          %p377 = pneg %p137
        $region62: #{tpu_custom_call.1} parent=47 // pred_check_branch
          %379 = sbr.rel (%p377) target = $region64
        $region63: #{tpu_custom_call.1} parent=47 // pred_region
          %381 = dma.done [#allocation9], 2048
        $region64: #{tpu_custom_call.1} parent=47 // pred_fallthru
          _
        // Predicated region
        $region65: #{tpu_custom_call.1} parent=47 // pred_check
          %p382 = pneg %p189
        $region66: #{tpu_custom_call.1} parent=47 // pred_check_branch
          %384 = sbr.rel (%p382) target = $region68
        $region67: #{tpu_custom_call.1} parent=47 // pred_region
          %386 = dma.done [#allocation9], 2048
        $region68: #{tpu_custom_call.1} parent=47 // pred_fallthru
          _
        %s387 = sand.u32 %s46, 1
        %s388 = scalar_lea.sflag [#allocation3], %s387
        %s389 = sand.u32 %s46, 1
        %s390 = smul.addr %s389, 8
        %s391 = scalar_lea.vmem [#allocation2], %s390
        %p392 = pneg %p59
        %p393 = pneg %p56
        %p394 = pneg %p85
        %p395 = pneg %p82
        %p396 = pneg %p111
        %p397 = pneg %p108
        %p398 = pneg %p137
        %p399 = pneg %p134
        %s400 = smul.u32 2, %s31
        %p401 = scmp.lt.s32.totalorder %s400, 1
        %s402 = scalar_select %p401, %s400, 1
        %s403 = scalar_lea.vmem %s4, %s402
        %p404 = pneg %p163
        %p405 = pneg %p160
        %p406 = pneg %p189
        %p407 = pneg %p186
        %p408 = pneg %p210
        %p409 = pneg %p207
        %p410 = pneg %p236
        %p411 = pneg %p233
        %s412 = sand.u32 %s223, 1
        %s413 = scalar_lea.sflag [#allocation4], %s412
        %s414 = sand.u32 %s223, 1
        %s415 = smul.addr %s414, 8
        %s416 = scalar_lea.vmem [#allocation11], %s415
        %s417 = smul.u32 2, %s31
        %s418 = smul.u32 2, %s31
        %s419 = smul.u32 2, %s31
        %s420 = smul.u32 2, %s31
        %p421 = scmp.lt.s32.totalorder %s420, 1
        %s422 = scalar_select %p421, %s420, 1
        %s423 = scalar_lea.vmem %s4, %s422
        %s424 = smul.u32 2, %s31
        %s425 = smul.u32 32, %s31
        %p426 = scmp.eq.s32.totalorder %s31, 0
        // Predicated region
        $region69: #{tpu_custom_call.1} parent=47 // pred_check
          %p427 = pneg %p426
        $region70: #{tpu_custom_call.1} parent=47 // pred_check_branch
          %429 = sbr.rel (%p427) target = $region72
        $region71: #{tpu_custom_call.1} parent=47 // pred_region
          %v430 = vld [vmem:[%s6] sm:$0x1]
          %v432 = vperm.slane %v430, 0
          %434 = vst [vmem:[%s416] sm:$0xff] %v432
        $region72: #{tpu_custom_call.1} parent=47 // pred_fallthru
          _
        %v435 = vld [vmem:[%s361] sm:$0xff]
        %v436 = vpack.c.bf16 %v435, %v435
        %v437 = vld [vmem:[#allocation5] sm:$0xff]
        %v438 = vld [vmem:[#allocation5 + $0x8] sm:$0xff]
        %v439 = vld [vmem:[#allocation5 + $0x10] sm:$0xff]
        %v440 = vld [vmem:[#allocation5 + $0x18] sm:$0xff]
        %v441 = vld [vmem:[#allocation5 + $0x20] sm:$0xff]
        %v442 = vld [vmem:[#allocation5 + $0x28] sm:$0xff]
        %v443 = vld [vmem:[#allocation5 + $0x30] sm:$0xff]
        %v444 = vld [vmem:[#allocation5 + $0x38] sm:$0xff]
        %v445 = vld [vmem:[#allocation5 + $0x40] sm:$0xff]
        %v446 = vld [vmem:[#allocation5 + $0x48] sm:$0xff]
        %v447 = vld [vmem:[#allocation5 + $0x50] sm:$0xff]
        %v448 = vld [vmem:[#allocation5 + $0x58] sm:$0xff]
        %v449 = vld [vmem:[#allocation5 + $0x60] sm:$0xff]
        %v450 = vld [vmem:[#allocation5 + $0x68] sm:$0xff]
        %v451 = vld [vmem:[#allocation5 + $0x70] sm:$0xff]
        %v452 = vld [vmem:[#allocation5 + $0x78] sm:$0xff]
        %v453 = vld [vmem:[#allocation7] sm:$0x3]
        %v455 = vperm.slane %v453, 0
        %v456 = vperm.slane %v453, 1
        %v475 = vunpack.c.l.b16 %v437
        %v476 = vunpack.c.h.b16 %v437
        %v477 = vunpack.c.l.b16 %v438
        %v478 = vunpack.c.h.b16 %v438
        %v479 = vunpack.c.l.b16 %v439
        %v480 = vunpack.c.h.b16 %v439
        %v481 = vunpack.c.l.b16 %v440
        %v482 = vunpack.c.h.b16 %v440
        %v483 = vunpack.c.l.b16 %v441
        %v484 = vunpack.c.h.b16 %v441
        %v485 = vunpack.c.l.b16 %v442
        %v486 = vunpack.c.h.b16 %v442
        %v487 = vunpack.c.l.b16 %v443
        %v488 = vunpack.c.h.b16 %v443
        %v489 = vunpack.c.l.b16 %v444
        %v490 = vunpack.c.h.b16 %v444
        %v491 = vunpack.c.l.b16 %v445
        %v492 = vunpack.c.h.b16 %v445
        %v493 = vunpack.c.l.b16 %v446
        %v494 = vunpack.c.h.b16 %v446
        %v495 = vunpack.c.l.b16 %v447
        %v496 = vunpack.c.h.b16 %v447
        %v497 = vunpack.c.l.b16 %v448
        %v498 = vunpack.c.h.b16 %v448
        %v499 = vunpack.c.l.b16 %v449
        %v500 = vunpack.c.h.b16 %v449
        %v501 = vunpack.c.l.b16 %v450
        %v502 = vunpack.c.h.b16 %v450
        %v503 = vunpack.c.l.b16 %v451
        %v504 = vunpack.c.h.b16 %v451
        %v505 = vunpack.c.l.b16 %v452
        %v506 = vunpack.c.h.b16 %v452
        %v507 = vpack.c.b16 %v477, %v475
        %v508 = vpack.c.b16 %v478, %v476
        %v509 = vpack.c.b16 %v481, %v479
        %v510 = vpack.c.b16 %v482, %v480
        %v511 = vpack.c.b16 %v485, %v483
        %v512 = vpack.c.b16 %v486, %v484
        %v513 = vpack.c.b16 %v489, %v487
        %v514 = vpack.c.b16 %v490, %v488
        %v515 = vpack.c.b16 %v493, %v491
        %v516 = vpack.c.b16 %v494, %v492
        %v517 = vpack.c.b16 %v497, %v495
        %v518 = vpack.c.b16 %v498, %v496
        %v519 = vpack.c.b16 %v501, %v499
        %v520 = vpack.c.b16 %v502, %v500
        %v521 = vpack.c.b16 %v505, %v503
        %v522 = vpack.c.b16 %v506, %v504
        %539 = vmatpush.bf16.msra.mxu0 %v521
        %540 = vmatpush.bf16.msra.mxu0 %v519
        %541 = vmatpush.bf16.msra.mxu0 %v517
        %542 = vmatpush.bf16.msra.mxu0 %v515
        %543 = vmatpush.bf16.msra.mxu0 %v513
        %544 = vmatpush.bf16.msra.mxu0 %v511
        %545 = vmatpush.bf16.msra.mxu0 %v509
        %546 = vmatpush.bf16.msra.mxu0 %v507
        %547 = vmatmul.bf16.gmra.mxu0 %v436
        %v548 = vpop.f32.mrf.mxu0
        %v549 = vadd.f32 %v455, %v548
        %v550 = vpop.f32.mrf.mxu0
        %551 = vdwg.mxu0
        %552 = vmatpush.bf16.msra.mxu0 %v522
        %553 = vmatpush.bf16.msra.mxu0 %v520
        %554 = vmatpush.bf16.msra.mxu0 %v518
        %555 = vmatpush.bf16.msra.mxu0 %v516
        %556 = vmatpush.bf16.msra.mxu0 %v514
        %557 = vmatpush.bf16.msra.mxu0 %v512
        %558 = vmatpush.bf16.msra.mxu0 %v510
        %559 = vmatpush.bf16.msra.mxu0 %v508
        %560 = vmatmul.bf16.gmra.mxu0 %v436
        %v561 = vpop.f32.mrf.mxu0
        %v562 = vadd.f32 %v456, %v561
        %v563 = vpop.f32.mrf.mxu0
        %564 = vdwg.mxu0
        %v565 = vld [vmem:[#allocation8] sm:$0xff]
        %v566 = vld [vmem:[#allocation8 + $0x8] sm:$0xff]
        %v567 = vld [vmem:[#allocation8 + $0x10] sm:$0xff]
        %v568 = vld [vmem:[#allocation8 + $0x18] sm:$0xff]
        %v569 = vld [vmem:[#allocation8 + $0x20] sm:$0xff]
        %v570 = vld [vmem:[#allocation8 + $0x28] sm:$0xff]
        %v571 = vld [vmem:[#allocation8 + $0x30] sm:$0xff]
        %v572 = vld [vmem:[#allocation8 + $0x38] sm:$0xff]
        %v573 = vld [vmem:[#allocation8 + $0x40] sm:$0xff]
        %v574 = vld [vmem:[#allocation8 + $0x48] sm:$0xff]
        %v575 = vld [vmem:[#allocation8 + $0x50] sm:$0xff]
        %v576 = vld [vmem:[#allocation8 + $0x58] sm:$0xff]
        %v577 = vld [vmem:[#allocation8 + $0x60] sm:$0xff]
        %v578 = vld [vmem:[#allocation8 + $0x68] sm:$0xff]
        %v579 = vld [vmem:[#allocation8 + $0x70] sm:$0xff]
        %v580 = vld [vmem:[#allocation8 + $0x78] sm:$0xff]
        %v581 = vld [vmem:[%s423] sm:$0x3]
        %v583 = vperm.slane %v581, 0
        %v584 = vperm.slane %v581, 1
        %v603 = vunpack.c.l.b16 %v565
        %v604 = vunpack.c.h.b16 %v565
        %v605 = vunpack.c.l.b16 %v566
        %v606 = vunpack.c.h.b16 %v566
        %v607 = vunpack.c.l.b16 %v567
        %v608 = vunpack.c.h.b16 %v567
        %v609 = vunpack.c.l.b16 %v568
        %v610 = vunpack.c.h.b16 %v568
        %v611 = vunpack.c.l.b16 %v569
        %v612 = vunpack.c.h.b16 %v569
        %v613 = vunpack.c.l.b16 %v570
        %v614 = vunpack.c.h.b16 %v570
        %v615 = vunpack.c.l.b16 %v571
        %v616 = vunpack.c.h.b16 %v571
        %v617 = vunpack.c.l.b16 %v572
        %v618 = vunpack.c.h.b16 %v572
        %v619 = vunpack.c.l.b16 %v573
        %v620 = vunpack.c.h.b16 %v573
        %v621 = vunpack.c.l.b16 %v574
        %v622 = vunpack.c.h.b16 %v574
        %v623 = vunpack.c.l.b16 %v575
        %v624 = vunpack.c.h.b16 %v575
        %v625 = vunpack.c.l.b16 %v576
        %v626 = vunpack.c.h.b16 %v576
        %v627 = vunpack.c.l.b16 %v577
        %v628 = vunpack.c.h.b16 %v577
        %v629 = vunpack.c.l.b16 %v578
        %v630 = vunpack.c.h.b16 %v578
        %v631 = vunpack.c.l.b16 %v579
        %v632 = vunpack.c.h.b16 %v579
        %v633 = vunpack.c.l.b16 %v580
        %v634 = vunpack.c.h.b16 %v580
        %v635 = vpack.c.b16 %v605, %v603
        %v636 = vpack.c.b16 %v606, %v604
        %v637 = vpack.c.b16 %v609, %v607
        %v638 = vpack.c.b16 %v610, %v608
        %v639 = vpack.c.b16 %v613, %v611
        %v640 = vpack.c.b16 %v614, %v612
        %v641 = vpack.c.b16 %v617, %v615
        %v642 = vpack.c.b16 %v618, %v616
        %v643 = vpack.c.b16 %v621, %v619
        %v644 = vpack.c.b16 %v622, %v620
        %v645 = vpack.c.b16 %v625, %v623
        %v646 = vpack.c.b16 %v626, %v624
        %v647 = vpack.c.b16 %v629, %v627
        %v648 = vpack.c.b16 %v630, %v628
        %v649 = vpack.c.b16 %v633, %v631
        %v650 = vpack.c.b16 %v634, %v632
        %667 = vmatpush.bf16.msra.mxu0 %v649
        %668 = vmatpush.bf16.msra.mxu0 %v647
        %669 = vmatpush.bf16.msra.mxu0 %v645
        %670 = vmatpush.bf16.msra.mxu0 %v643
        %671 = vmatpush.bf16.msra.mxu0 %v641
        %672 = vmatpush.bf16.msra.mxu0 %v639
        %673 = vmatpush.bf16.msra.mxu0 %v637
        %674 = vmatpush.bf16.msra.mxu0 %v635
        %675 = vmatmul.bf16.gmra.mxu0 %v436
        %v676 = vpop.f32.mrf.mxu0
        %v677 = vadd.f32 %v583, %v676
        %v678 = vpop.f32.mrf.mxu0
        %679 = vdwg.mxu0
        %680 = vmatpush.bf16.msra.mxu0 %v650
        %681 = vmatpush.bf16.msra.mxu0 %v648
        %682 = vmatpush.bf16.msra.mxu0 %v646
        %683 = vmatpush.bf16.msra.mxu0 %v644
        %684 = vmatpush.bf16.msra.mxu0 %v642
        %685 = vmatpush.bf16.msra.mxu0 %v640
        %686 = vmatpush.bf16.msra.mxu0 %v638
        %687 = vmatpush.bf16.msra.mxu0 %v636
        %688 = vmatmul.bf16.gmra.mxu0 %v436
        %v689 = vpop.f32.mrf.mxu0
        %v690 = vadd.f32 %v584, %v689
        %v691 = vpop.f32.mrf.mxu0
        %692 = vdwg.mxu0
        %v693 = vxor.u32 %v677, 2147483648
        %v694 = vxor.u32 %v690, 2147483648
        %v695 = vmul.f32 %v693, 1.442695
        %v696 = vpow.pop %v695
        %v697 = vmul.f32 %v694, 1.442695
        %v698 = vpow.pop %v697
        %v699 = vadd.f32 %v696, 1.0
        %v700 = vadd.f32 %v698, 1.0
        %v701 = vrcp.pop %v699
        %v702 = vmul.f32 %v699, %v701
        %v703 = vsub.f32 1.0, %v702
        %v704 = vmul.f32 %v701, %v703
        %v705 = vadd.f32 %v701, %v704
        %vm706 = vweird.f32 %v699
        %vm707 = vweird.f32 %v701
        %vm708 = vmor %vm706, %vm707
        %v709 = vsel %vm708, %v701, %v705
        %v710 = vand.u32 2147483647, %v699
        %vm711 = vcmp.eq.f32.partialorder %v710, 8.507059e+37
        %v712 = vand.u32 %v699, 2147483648
        %v713 = vor.u32 1.1754944e-38, %v712
        %v714 = vsel %vm711, %v713, %v709
        %v715 = vmul.f32 1.0, %v714
        %v716 = vrcp.pop %v700
        %v717 = vmul.f32 %v700, %v716
        %v718 = vsub.f32 1.0, %v717
        %v719 = vmul.f32 %v716, %v718
        %v720 = vadd.f32 %v716, %v719
        %vm721 = vweird.f32 %v700
        %vm722 = vweird.f32 %v716
        %vm723 = vmor %vm721, %vm722
        %v724 = vsel %vm723, %v716, %v720
        %v725 = vand.u32 2147483647, %v700
        %vm726 = vcmp.eq.f32.partialorder %v725, 8.507059e+37
        %v727 = vand.u32 %v700, 2147483648
        %v728 = vor.u32 1.1754944e-38, %v727
        %v729 = vsel %vm726, %v728, %v724
        %v730 = vmul.f32 1.0, %v729
        %v731 = vmul.f32 %v677, %v715
        %v732 = vmul.f32 %v690, %v730
        %v733 = vpack.c.bf16 %v562, %v549
        %v734 = vpack.c.bf16 %v732, %v731
        %v735 = vunpack.c.l.bf16 %v733
        %v736 = vunpack.c.h.bf16 %v733
        %v737 = vunpack.c.l.bf16 %v734
        %v738 = vunpack.c.h.bf16 %v734
        %v739 = vmul.f32 %v735, %v737
        %v740 = vmul.f32 %v736, %v738
        %v741 = vpack.c.bf16 %v739, %v739
        %v742 = vpack.c.bf16 %v740, %v740
        %v743 = vld [vmem:[%s416] sm:$0xff]
        %v744 = vld [vmem:[#allocation10] sm:$0xf]
        %v745 = vld [vmem:[#allocation10 + $0x4] sm:$0xf]
        %v746 = vld [vmem:[#allocation10 + $0x8] sm:$0xf]
        %v747 = vld [vmem:[#allocation10 + $0xc] sm:$0xf]
        %v748 = vld [vmem:[#allocation10 + $0x10] sm:$0xf]
        %v749 = vld [vmem:[#allocation10 + $0x14] sm:$0xf]
        %v750 = vld [vmem:[#allocation10 + $0x18] sm:$0xf]
        %v751 = vld [vmem:[#allocation10 + $0x1c] sm:$0xf]
        %v752 = vld [vmem:[#allocation10 + $0x20] sm:$0xf]
        %v753 = vld [vmem:[#allocation10 + $0x24] sm:$0xf]
        %v754 = vld [vmem:[#allocation10 + $0x28] sm:$0xf]
        %v755 = vld [vmem:[#allocation10 + $0x2c] sm:$0xf]
        %v756 = vld [vmem:[#allocation10 + $0x30] sm:$0xf]
        %v757 = vld [vmem:[#allocation10 + $0x34] sm:$0xf]
        %v758 = vld [vmem:[#allocation10 + $0x38] sm:$0xf]
        %v759 = vld [vmem:[#allocation10 + $0x3c] sm:$0xf]
        %v760 = vld [vmem:[#allocation10 + $0x40] sm:$0xf]
        %v761 = vld [vmem:[#allocation10 + $0x44] sm:$0xf]
        %v762 = vld [vmem:[#allocation10 + $0x48] sm:$0xf]
        %v763 = vld [vmem:[#allocation10 + $0x4c] sm:$0xf]
        %v764 = vld [vmem:[#allocation10 + $0x50] sm:$0xf]
        %v765 = vld [vmem:[#allocation10 + $0x54] sm:$0xf]
        %v766 = vld [vmem:[#allocation10 + $0x58] sm:$0xf]
        %v767 = vld [vmem:[#allocation10 + $0x5c] sm:$0xf]
        %v768 = vld [vmem:[#allocation10 + $0x60] sm:$0xf]
        %v769 = vld [vmem:[#allocation10 + $0x64] sm:$0xf]
        %v770 = vld [vmem:[#allocation10 + $0x68] sm:$0xf]
        %v771 = vld [vmem:[#allocation10 + $0x6c] sm:$0xf]
        %v772 = vld [vmem:[#allocation10 + $0x70] sm:$0xf]
        %v773 = vld [vmem:[#allocation10 + $0x74] sm:$0xf]
        %v774 = vld [vmem:[#allocation10 + $0x78] sm:$0xf]
        %v775 = vld [vmem:[#allocation10 + $0x7c] sm:$0xf]
        %v808 = vunpack.c.l.b16 %v744
        %v809 = vunpack.c.l.b16 %v745
        %v810 = vunpack.c.l.b16 %v746
        %v811 = vunpack.c.l.b16 %v747
        %v812 = vunpack.c.l.b16 %v748
        %v813 = vunpack.c.l.b16 %v749
        %v814 = vunpack.c.l.b16 %v750
        %v815 = vunpack.c.l.b16 %v751
        %v816 = vunpack.c.l.b16 %v752
        %v817 = vunpack.c.l.b16 %v753
        %v818 = vunpack.c.l.b16 %v754
        %v819 = vunpack.c.l.b16 %v755
        %v820 = vunpack.c.l.b16 %v756
        %v821 = vunpack.c.l.b16 %v757
        %v822 = vunpack.c.l.b16 %v758
        %v823 = vunpack.c.l.b16 %v759
        %v824 = vunpack.c.l.b16 %v760
        %v825 = vunpack.c.l.b16 %v761
        %v826 = vunpack.c.l.b16 %v762
        %v827 = vunpack.c.l.b16 %v763
        %v828 = vunpack.c.l.b16 %v764
        %v829 = vunpack.c.l.b16 %v765
        %v830 = vunpack.c.l.b16 %v766
        %v831 = vunpack.c.l.b16 %v767
        %v832 = vunpack.c.l.b16 %v768
        %v833 = vunpack.c.l.b16 %v769
        %v834 = vunpack.c.l.b16 %v770
        %v835 = vunpack.c.l.b16 %v771
        %v836 = vunpack.c.l.b16 %v772
        %v837 = vunpack.c.l.b16 %v773
        %v838 = vunpack.c.l.b16 %v774
        %v839 = vunpack.c.l.b16 %v775
        %v840 = vpack.c.b16 %v809, %v808
        %v841 = vpack.c.b16 %v811, %v810
        %v842 = vpack.c.b16 %v813, %v812
        %v843 = vpack.c.b16 %v815, %v814
        %v844 = vpack.c.b16 %v817, %v816
        %v845 = vpack.c.b16 %v819, %v818
        %v846 = vpack.c.b16 %v821, %v820
        %v847 = vpack.c.b16 %v823, %v822
        %v848 = vpack.c.b16 %v825, %v824
        %v849 = vpack.c.b16 %v827, %v826
        %v850 = vpack.c.b16 %v829, %v828
        %v851 = vpack.c.b16 %v831, %v830
        %v852 = vpack.c.b16 %v833, %v832
        %v853 = vpack.c.b16 %v835, %v834
        %v854 = vpack.c.b16 %v837, %v836
        %v855 = vpack.c.b16 %v839, %v838
        %872 = vmatpush.bf16.msra.mxu0 %v847
        %873 = vmatpush.bf16.msra.mxu0 %v846
        %874 = vmatpush.bf16.msra.mxu0 %v845
        %875 = vmatpush.bf16.msra.mxu0 %v844
        %876 = vmatpush.bf16.msra.mxu0 %v843
        %877 = vmatpush.bf16.msra.mxu0 %v842
        %878 = vmatpush.bf16.msra.mxu0 %v841
        %879 = vmatpush.bf16.msra.mxu0 %v840
        %880 = vmatmul.bf16.gmra.mxu0 %v741
        %v881 = vpop.f32.mrf.mxu0
        %v882 = vadd.f32 0.0, %v881
        %v883 = vpop.f32.mrf.mxu0
        %884 = vdwg.mxu0
        %885 = vmatpush.bf16.msra.mxu0 %v855
        %886 = vmatpush.bf16.msra.mxu0 %v854
        %887 = vmatpush.bf16.msra.mxu0 %v853
        %888 = vmatpush.bf16.msra.mxu0 %v852
        %889 = vmatpush.bf16.msra.mxu0 %v851
        %890 = vmatpush.bf16.msra.mxu0 %v850
        %891 = vmatpush.bf16.msra.mxu0 %v849
        %892 = vmatpush.bf16.msra.mxu0 %v848
        %893 = vmatmul.bf16.gmra.mxu0 %v742
        %v894 = vpop.f32.mrf.mxu0
        %v895 = vadd.f32 %v882, %v894
        %v896 = vpop.f32.mrf.mxu0
        %897 = vdwg.mxu0
        %v898 = vadd.f32 %v743, %v895
        %899 = vst [vmem:[%s416] sm:$0xff] %v898
        %s900 = sand.u32 %s223, 1
        %s901 = scalar_lea.sflag [#allocation4], %s900
        %s902 = sand.u32 %s223, 1
        %s903 = smul.addr %s902, 8
        %s904 = scalar_lea.vmem [#allocation11], %s903
        // Predicated region
        $region73: #{tpu_custom_call.1} parent=47 // pred_check
          %p905 = pneg %p233
        $region74: #{tpu_custom_call.1} parent=47 // pred_check_branch
          %907 = sbr.rel (%p905) target = $region76
        $region75: #{tpu_custom_call.1} parent=47 // pred_region
          %909 = vsyncadd %s901, 0
          %s910 = smul.addr %s30, 8
          %s911 = scalar_lea.hbm %s7, %s910
          %s913 = sshll.u32 %s904, 4
          %s914 = int_to_ptr.vmem [resolvable:$true] %s913
          %s915 = sshll.u32 %s911, 4
          %s916 = int_to_ptr.hbm [resolvable:$true] %s915
          %918 = dma.vmem_to_hbm [thread:$0]  %s914, 128, %s916, %s901
        $region76: #{tpu_custom_call.1} parent=47 // pred_fallthru
          _
      $region48: #{tpu_custom_call.1} parent=5 // pred_fallthru
        _
      %p919 = scmp.le.s32.totalorder 2, %s21
      // Predicated region
      $region77: #{tpu_custom_call.1} parent=5 // pred_check
        %p920 = pneg %p919
      $region78: #{tpu_custom_call.1} parent=5 // pred_check_branch
        %922 = sbr.rel (%p920) target = $region80
      $region79: #{tpu_custom_call.1} parent=5 // pred_region
        %s923 = ssub.s32 %s21, 2
        // Predicated region
        $region81: #{tpu_custom_call.1} parent=79 // pred_check
          %p924 = pneg %p239
        $region82: #{tpu_custom_call.1} parent=79 // pred_check_branch
          %926 = sbr.rel (%p924) target = $region84
        $region83: #{tpu_custom_call.1} parent=79 // pred_region
          %s927 = sand.u32 %s224, 1
          %s928 = scalar_lea.sflag [#allocation4], %s927
          %s929 = sand.u32 %s224, 1
          %s930 = smul.addr %s929, 8
          %s931 = scalar_lea.vmem [#allocation11], %s930
          %933 = dma.done %s928, 128
        $region84: #{tpu_custom_call.1} parent=79 // pred_fallthru
          _
      $region80: #{tpu_custom_call.1} parent=5 // pred_fallthru
        _
    $region6: #{tpu_custom_call.1} parent=1 // loop_footer
      %s25 = sadd.s32 1, %s21
    $region7: #{tpu_custom_call.1} parent=1 // loop_footer_branch
      %20 = sbr.rel target = $region3
    $region8: #{tpu_custom_call.1} parent=1 // loop_exit
      _
    %934 = vsyncpa [#allocation3], 1
    %s935 = scalar_lea.sflag [#allocation3], 1
    %936 = vsyncpa %s935, 1
    %937 = vsyncpa [#allocation6], 1
    %938 = vsyncpa [#allocation9], 1
    %939 = vsyncpa [#allocation4], 1
    %s940 = scalar_lea.sflag [#allocation4], 1
    %941 = vsyncpa %s940, 1

</llo_original>
